<compile_context>
chip_gen: v7x
topology: tpu7x:2x2x1
jax: 0.10.0
libtpu: 0.0.40
codegen_flags: <defaults>
</compile_context>

<pallas_src>
import functools

import jax
import jax.numpy as jnp
from jax.experimental import pallas as pl
from jax.experimental.pallas import tpu as pltpu


# ---------------------------------------------------------------------------
# 1) key projection: k[b] = (Wk @ x[b] + bk)^T   -> (HW, C) channels-last bf16
#    (channels-last so the wmax dot needs no per-step relayout of the key tile)
# ---------------------------------------------------------------------------
def _key_kernel(x_ref, wk_ref, bk_ref, k_ref):
    xb = x_ref[0].astype(jnp.bfloat16)                           # (C, HW) native NCHW tile
    kb = jnp.dot(wk_ref[...], xb,
                 preferred_element_type=jnp.float32) + bk_ref[...]   # (C, HW) f32
    # one small in-kernel XLU transpose per image (rides a free slot; mem-bound stage)
    k_ref[0] = jnp.transpose(kb).astype(jnp.bfloat16)            # (HW, C)


# ---------------------------------------------------------------------------
# 2) streamed correlation + fused softmax + prototype partial sum.
#    grid = (query image b [parallel], key block j [arbitrary])
#      j == 0      : q = Wq @ x[b] + bq into VMEM scratch (no HBM round trip)
#      every j     : for each key image in the block:
#                      s = k_img (HW,C) @ q (C,HW)   -> per-image max over keys
#                      lands on the LANE axis -> lane-dense (1, HW) accumulator
#      j == last   : logits = acc * scale/B ; softmax over HW (fused);
#                    psum[b] = sum_hw x[b,:,hw] * w[hw]   -> (C, 1)
#    NOTE: the attention weight w never leaves VMEM.
# ---------------------------------------------------------------------------
def _wmax_kernel(x_ref, k_ref, wq_ref, bq_ref, psum_ref, q_scr, acc_scr,
                 *, kb, nb, scale):
    j = pl.program_id(1)
    nj = pl.num_programs(1)

    @pl.when(j == 0)
    def _():
        xb = x_ref[0].astype(jnp.bfloat16)                       # (C, HW)
        q = jnp.dot(wq_ref[...], xb,
                    preferred_element_type=jnp.float32) + bq_ref[...]
        q_scr[...] = q.astype(jnp.bfloat16)                      # resident across key axis
        acc_scr[...] = jnp.zeros_like(acc_scr)

    # TODO(synk): when HW < 256 the MXU output width (queries) is under-filled on
    # v6e/v7x; batching several query images per step (one relayout per block)
    # would restore full width.  Key blocks already amortize per-step overhead.
    acc = acc_scr[...]
    for i in range(kb):                                          # static, small
        s = jnp.dot(k_ref[i], q_scr[...],
                    preferred_element_type=jnp.float32)          # (HW_k, HW_q)
        acc = acc + jnp.max(s, axis=0, keepdims=True)            # (1, HW_q) lane-dense
    acc_scr[...] = acc

    @pl.when(j == nj - 1)
    def _():
        logits = acc_scr[...] * (scale / nb)                     # mean over key images * scale
        m = jnp.max(logits, axis=-1, keepdims=True)
        e = jnp.exp(logits - m)
        w = e / jnp.sum(e, axis=-1, keepdims=True)               # (1, HW) f32 softmax
        # per-image contribution to the prototype (conv6 applied later, once, f32)
        psum_ref[0] = jnp.sum(x_ref[0] * w, axis=-1, keepdims=True)   # (C, 1)


# ---------------------------------------------------------------------------
# 4) out[b] = x[b] * proto     (written directly in native (B, C, HW) layout)
# ---------------------------------------------------------------------------
def _scale_kernel(x_ref, proto_ref, out_ref):
    out_ref[0] = x_ref[0] * proto_ref[...]


def coatt_layer(x_nchw, wq, bq, wk, bk, wc, bc):
    """x_nchw: (B, C, H, W) f32. 1x1 conv weights w*: (C_out, C_in); biases (C,)."""
    B, C, H, W = x_nchw.shape
    HW = H * W
    scale = 1.0 / (C ** 0.5)

    x3 = x_nchw.reshape(B, C, HW)                                # free reshape (native layout)

    wq_b = wq.astype(jnp.bfloat16)
    wk_b = wk.astype(jnp.bfloat16)
    bq_c = bq.reshape(C, 1).astype(jnp.float32)
    bk_c = bk.reshape(C, 1).astype(jnp.float32)

    # key-block size: largest whole-image count KB dividing B whose double-buffered
    # bf16 block fits a conservative budget (v7x: 64 MiB physical VMEM, 32 scoped).
    budget = 8 * 1024 * 1024
    KB = 1
    for cand in range(B, 0, -1):
        if B % cand == 0 and 2 * cand * HW * C * 2 <= budget:
            KB = cand
            break
    nkb = B // KB          # if KB == B the single key block stays VMEM-resident

    def _params(sem):
        return pltpu.CompilerParams(dimension_semantics=sem,
                                    vmem_limit_bytes=32 * 1024 * 1024)

    # ---- 1) key projection (grid over images, megacore-parallel) -----------
    k_cl = pl.pallas_call(
        _key_kernel,
        grid=(B,),
        in_specs=[pl.BlockSpec((1, C, HW), lambda b: (b, 0, 0)),
                  pl.BlockSpec((C, C), lambda b: (0, 0)),        # resident weight
                  pl.BlockSpec((C, 1), lambda b: (0, 0))],       # resident bias
        out_specs=pl.BlockSpec((1, HW, C), lambda b: (b, 0, 0)),
        out_shape=jax.ShapeDtypeStruct((B, HW, C), jnp.bfloat16),
        compiler_params=_params(("parallel",)),
    )(x3, wk_b, bk_c)

    # ---- 2) streamed wmax + fused softmax + prototype partial sums ----------
    psum = pl.pallas_call(
        functools.partial(_wmax_kernel, kb=KB, nb=B, scale=scale),
        grid=(B, nkb),                                           # key axis last, "arbitrary"
        in_specs=[pl.BlockSpec((1, C, HW), lambda b, j: (b, 0, 0)),   # query image (resident)
                  pl.BlockSpec((KB, HW, C), lambda b, j: (j, 0, 0)),  # streamed key block
                  pl.BlockSpec((C, C), lambda b, j: (0, 0)),          # resident Wq
                  pl.BlockSpec((C, 1), lambda b, j: (0, 0))],         # resident bq
        out_specs=pl.BlockSpec((1, C, 1), lambda b, j: (b, 0, 0)),
        out_shape=jax.ShapeDtypeStruct((B, C, 1), jnp.float32),
        scratch_shapes=[pltpu.VMEM((C, HW), jnp.bfloat16),       # q (per query image)
                        pltpu.VMEM((1, HW), jnp.float32)],       # lane-dense accumulator
        compiler_params=_params(("parallel", "arbitrary")),
    )(x3, k_cl, wq_b, bq_c)

    # ---- 3) conv6 linearity: proto = Wc @ mean(x*w) + bc (tiny f32 matvec) --
    s_vec = jnp.sum(psum[:, :, 0], axis=0) / float(B * HW)       # (C,)  mean over all pixels
    proto = (jnp.dot(wc, s_vec) + bc).reshape(C, 1).astype(jnp.float32)

    # ---- 4) out = x * proto (native layout, grid over images) ---------------
    out3 = pl.pallas_call(
        _scale_kernel,
        grid=(B,),
        in_specs=[pl.BlockSpec((1, C, HW), lambda b: (b, 0, 0)),
                  pl.BlockSpec((C, 1), lambda b: (0, 0))],       # resident prototype
        out_specs=pl.BlockSpec((1, C, HW), lambda b: (b, 0, 0)),
        out_shape=jax.ShapeDtypeStruct((B, C, HW), jnp.float32),
        compiler_params=_params(("parallel",)),
    )(x3, proto)

    # TODO(synk): training path with config.loadN > 1 (per-class grouping) is this
    # same pipeline applied to contiguous batch slices; only the eval path is here.
    return out3.reshape(B, C, H, W)                              # free reshape, no transpose


def coatt_layer_ref(x, wq, bq, wk, bk, wc, bc):
    """Pure-JAX f32 reference mirroring the PyTorch forward (eval path)."""
    B, C, H, W = x.shape
    HW = H * W
    scale = 1.0 / (C ** 0.5)

    def conv1x1(inp, w, b):  # NCHW 1x1 conv
        return jnp.einsum('bchw,oc->bohw', inp, w) + b.reshape(1, C, 1, 1)

    xq = conv1x1(x, wq, bq).reshape(B, C, HW)
    xq = jnp.transpose(xq, (0, 2, 1)).reshape(-1, C)             # (B*HW, C)
    xk = conv1x1(x, wk, bk).reshape(B, C, HW)
    xk = jnp.transpose(xk, (1, 0, 2)).reshape(C, -1)             # (C, B*HW)
    xw = xq @ xk                                                 # (B*HW, B*HW)
    xw = xw.reshape(B * HW, B, HW)
    xw = jnp.max(xw, axis=-1)
    xw = jnp.mean(xw, axis=-1)
    xw = xw.reshape(B, -1) * scale
    xw = jax.nn.softmax(xw, axis=-1)
    xw = xw.reshape(B, 1, H, W)
    x_att = x * xw
    x_new = conv1x1(x_att, wc, bc)
    x_proto = jnp.mean(x_new, axis=(0, 2, 3)).reshape(1, C, 1, 1)
    return x * x_proto


if __name__ == "__main__":
    # Small, tile-friendly shapes: B=2, C=128, H=W=8  ->  HW = 64, N = 128
    B, C, H, W = 2, 128, 8, 8

    key = jax.random.PRNGKey(0)
    kx, ka, kb_, kc, kd, ke, kf = jax.random.split(key, 7)

    x = jax.random.normal(kx, (B, C, H, W), dtype=jnp.float32)

    # deterministic synthetic parameters (1x1 conv -> (C_out, C_in) matrices)
    wq = jax.random.normal(ka, (C, C), dtype=jnp.float32) * 0.05
    bq = jax.random.normal(kb_, (C,), dtype=jnp.float32) * 0.01
    wk = jax.random.normal(kc, (C, C), dtype=jnp.float32) * 0.05
    bk = jax.random.normal(kd, (C,), dtype=jnp.float32) * 0.01
    wc = jax.random.normal(ke, (C, C), dtype=jnp.float32) * 0.05
    bc = jax.random.normal(kf, (C,), dtype=jnp.float32) * 0.01

    out = jax.block_until_ready(coatt_layer(x, wq, bq, wk, bk, wc, bc))
    ref = jax.block_until_ready(coatt_layer_ref(x, wq, bq, wk, bk, wc, bc))

    assert out.shape == (B, C, H, W)
    # bf16 is used only for the q/k MXU operands (f32 accumulation); the proto /
    # output path is f32 end-to-end, so the tolerance is comfortably met.
    assert jnp.allclose(out, ref, rtol=2e-2, atol=2e-3), "mismatch vs reference"

    print("KERNEL_OK")
</pallas_src>

<mosaic_0001>
module attributes {stable_mosaic.version = 11 : i64} {
  func.func @_key_kernel(%arg0: i32, %arg1: memref<1x128x64xf32, #tpu.memory_space<vmem>>, %arg2: memref<128x128xbf16, #tpu.memory_space<vmem>>, %arg3: memref<128x1xf32, #tpu.memory_space<vmem>>, %arg4: memref<1x64x128xbf16, #tpu.memory_space<vmem>>) attributes {dimension_semantics = [#tpu.dimension_semantics<parallel>], iteration_bounds = array<i64: 2>, scalar_prefetch = 0 : i64, scratch_operands = 0 : i64, tpu.core_type = #tpu.core_type<tc>, window_params = [{transform_indices = @transform_0, window_bounds = array<i64: 1, 128, 64>}, {pipeline_mode = #tpu.pipeline_mode<synchronous>, transform_indices = @transform_1, window_bounds = array<i64: 128, 128>}, {pipeline_mode = #tpu.pipeline_mode<synchronous>, transform_indices = @transform_2, window_bounds = array<i64: 128, 1>}, {transform_indices = @transform_3, window_bounds = array<i64: 1, 64, 128>}]} {
    %c0 = arith.constant 0 : index
    %c0_0 = arith.constant 0 : index
    %c0_1 = arith.constant 0 : index
    %0 = vector.load %arg1[%c0, %c0_0, %c0_1] : memref<1x128x64xf32, #tpu.memory_space<vmem>>, vector<1x128x64xf32>
    %1 = vector.shape_cast %0 : vector<1x128x64xf32> to vector<128x64xf32>
    %2 = arith.truncf %1 : vector<128x64xf32> to vector<128x64xbf16>
    %c0_2 = arith.constant 0 : index
    %c0_3 = arith.constant 0 : index
    %3 = vector.load %arg2[%c0_2, %c0_3] : memref<128x128xbf16, #tpu.memory_space<vmem>>, vector<128x128xbf16>
    %cst = arith.constant dense<0.000000e+00> : vector<128x64xf32>
    %4 = tpu.matmul %3, %2, %cst {dimension_numbers = #tpu.dot_dimension_numbers<[1], [0], [0], [1], [0, 0, 1, 1], [], []>} : vector<128x128xbf16>, vector<128x64xbf16>, vector<128x64xf32> -> vector<128x64xf32>
    %c0_4 = arith.constant 0 : index
    %c0_5 = arith.constant 0 : index
    %5 = vector.load %arg3[%c0_4, %c0_5] : memref<128x1xf32, #tpu.memory_space<vmem>>, vector<128x1xf32>
    %6 = vector.broadcast %5 : vector<128x1xf32> to vector<128x64xf32>
    %7 = arith.addf %4, %6 : vector<128x64xf32>
    %8 = tpu.transpose %7, [1, 0] : vector<128x64xf32> -> vector<64x128xf32>
    %9 = arith.truncf %8 : vector<64x128xf32> to vector<64x128xbf16>
    %c0_6 = arith.constant 0 : index
    %c0_7 = arith.constant 0 : index
    %c0_8 = arith.constant 0 : index
    %10 = vector.load %arg4[%c0_6, %c0_7, %c0_8] : memref<1x64x128xbf16, #tpu.memory_space<vmem>>, vector<1x64x128xbf16>
    %11 = vector.shape_cast %10 : vector<1x64x128xbf16> to vector<64x128xbf16>
    %12 = vector.shape_cast %9 : vector<64x128xbf16> to vector<1x64x128xbf16>
    tpu.vector_store %arg4[%c0_6, %c0_7, %c0_8], %12 {strides = array<i32>} : memref<1x64x128xbf16, #tpu.memory_space<vmem>>, vector<1x64x128xbf16>,
    return
  }
  func.func @transform_0(%arg0: i32) -> (i32, i32, i32) {
    %c0_i32 = arith.constant 0 : i32
    %c0_i32_0 = arith.constant 0 : i32
    %c0_i32_1 = arith.constant 0 : i32
    return %arg0, %c0_i32, %c0_i32_0 : i32, i32, i32
  }
  func.func @transform_1(%arg0: i32) -> (i32, i32) {
    %c0_i32 = arith.constant 0 : i32
    %c0_i32_0 = arith.constant 0 : i32
    %c0_i32_1 = arith.constant 0 : i32
    return %c0_i32, %c0_i32_0 : i32, i32
  }
  func.func @transform_2(%arg0: i32) -> (i32, i32) {
    %c0_i32 = arith.constant 0 : i32
    %c0_i32_0 = arith.constant 0 : i32
    %c0_i32_1 = arith.constant 0 : i32
    return %c0_i32, %c0_i32_0 : i32, i32
  }
  func.func @transform_3(%arg0: i32) -> (i32, i32, i32) {
    %c0_i32 = arith.constant 0 : i32
    %c0_i32_0 = arith.constant 0 : i32
    %c0_i32_1 = arith.constant 0 : i32
    return %arg0, %c0_i32, %c0_i32_0 : i32, i32, i32
  }
}

</mosaic_0001>

<llo_original>
// kernel: tpu_custom_call.1
$region0: #{tpu_custom_call.1}
  #allocation0 [shape = 'u32[]', space=smem, size = 0x4, offset = 0x4, fixed_abs, tag = 'smem constant byte address 0x4 - core index']
  #allocation1 [shape = 'u32[144,128]{1,0:T(1,128)}', space=vmem, size = 0x12000, scoped, tag = 'internal scratch']
  %s0 = inlined_call_operand.vmem [shape: f32[2,128,64], index: 0, kind: input, shape index: {}]
  %s1 = inlined_call_operand.vmem [shape: bf16[128,128], index: 1, kind: input, shape index: {}]
  %s2 = inlined_call_operand.vmem [shape: f32[128,1], index: 2, kind: input, shape index: {}]
  %s3 = inlined_call_operand.hbm [shape: bf16[2,64,128], index: 3, kind: output, shape index: {}]
  %s4 = sld [smem:[#allocation0]]
  $region45: #{tpu_custom_call.1} parent=0
    _
  %s6 = ssub.s32 1, %s4
  %s7 = scalar_select 0, %s6, %s4
  $region1: #{tpu_custom_call.1} parent=0
    #allocation2 [shape = 'u8[32768]{0}', space=vmem, size = 0x8000, scoped, tag = 'output window, operand 0']
    #allocation3 [shape = 's32[2]{0}', space=sflag, size = 0x8, scoped, tag = 'scoped memory for tpu_custom_call.1']
    %8 = vsyncpa [#allocation3], 0
    %s9 = scalar_lea.sflag [#allocation3], 1
    %10 = vsyncpa %s9, 0
    loop: start=0, step=1, limit=4
    $region2: #{tpu_custom_call.1} parent=1 // loop_pre_header
      _
    $region3: #{tpu_custom_call.1} parent=1 // loop_header
      %s12 = sphi 0, %s16
      %p13 = scmp.ge.s32.totalorder %s12, 4
      %s22 = sphi 0, %s24
      %s25 = sphi 0, %s22
      %s26 = sphi 0, %s25
      %s42 = sphi 0, %s26
      %s46 = sphi 0, %s46
      %s48 = sphi 0, %s46
      %s49 = sphi 0, %s48
      %s63 = sphi 0, %s49
      %s67 = sphi 0, %s67
      %s69 = sphi 0, %s67
      %s70 = sphi 0, %s69
      %s84 = sphi 0, %s70
      %s90 = sphi 0, %s92
      %s93 = sphi 0, %s90
      %s94 = sphi 0, %s93
      %s110 = sphi 0, %s94
    $region4: #{tpu_custom_call.1} parent=1 // loop_header_branch
      %15 = sbr.rel (%p13) target = $region8
    $region5: #{tpu_custom_call.1} parent=1 // loop_body
      %s17 = ssub.s32 %s12, 1
      %s18 = ssub.s32 %s12, 2
      %s19 = sadd.s32 %s12, 1
      %s20 = ssub.s32 %s12, %s19
      %p21 = scmp.eq.s32.totalorder %s20, 0
      %s23 = sadd.s32 %s22, 1
      %s24 = scalar_select %p21, %s22, %s23
      %p27 = pneg %p21
      %p28 = scmp.eq.s32.totalorder %s12, 1
      %p29 = por %p27, %p28
      %p30 = scmp.ne.s32.totalorder %s22, %s25
      %p31 = scmp.eq.s32.totalorder %s12, 0
      %p32 = por %p30, %p31
      %p33 = scmp.ne.s32.totalorder %s22, %s25
      %p34 = scmp.eq.s32.totalorder %s17, 1
      %p35 = por %p33, %p34
      %p36 = scmp.ne.s32.totalorder %s25, %s26
      %p37 = scmp.eq.s32.totalorder %s17, 0
      %p38 = por %p36, %p37
      %p39 = scmp.ne.s32.totalorder %s25, %s26
      %p40 = scmp.eq.s32.totalorder %s18, 1
      %p41 = por %p39, %p40
      %p43 = scmp.ne.s32.totalorder %s26, %s42
      %p44 = scmp.eq.s32.totalorder %s18, 0
      %p45 = por %p43, %p44
      %s47 = sadd.s32 %s46, 1
      %p50 = scmp.eq.s32.totalorder %s12, 1
      %p51 = scmp.ne.s32.totalorder %s46, %s48
      %p52 = scmp.eq.s32.totalorder %s12, 0
      %p53 = por %p51, %p52
      %p54 = scmp.ne.s32.totalorder %s46, %s48
      %p55 = scmp.eq.s32.totalorder %s17, 1
      %p56 = por %p54, %p55
      %p57 = scmp.ne.s32.totalorder %s48, %s49
      %p58 = scmp.eq.s32.totalorder %s17, 0
      %p59 = por %p57, %p58
      %p60 = scmp.ne.s32.totalorder %s48, %s49
      %p61 = scmp.eq.s32.totalorder %s18, 1
      %p62 = por %p60, %p61
      %p64 = scmp.ne.s32.totalorder %s49, %s63
      %p65 = scmp.eq.s32.totalorder %s18, 0
      %p66 = por %p64, %p65
      %s68 = sadd.s32 %s67, 1
      %p71 = scmp.eq.s32.totalorder %s12, 1
      %p72 = scmp.ne.s32.totalorder %s67, %s69
      %p73 = scmp.eq.s32.totalorder %s12, 0
      %p74 = por %p72, %p73
      %p75 = scmp.ne.s32.totalorder %s67, %s69
      %p76 = scmp.eq.s32.totalorder %s17, 1
      %p77 = por %p75, %p76
      %p78 = scmp.ne.s32.totalorder %s69, %s70
      %p79 = scmp.eq.s32.totalorder %s17, 0
      %p80 = por %p78, %p79
      %p81 = scmp.ne.s32.totalorder %s69, %s70
      %p82 = scmp.eq.s32.totalorder %s18, 1
      %p83 = por %p81, %p82
      %p85 = scmp.ne.s32.totalorder %s70, %s84
      %p86 = scmp.eq.s32.totalorder %s18, 0
      %p87 = por %p85, %p86
      %s88 = ssub.s32 %s12, %s19
      %p89 = scmp.eq.s32.totalorder %s88, 0
      %s91 = sadd.s32 %s90, 1
      %s92 = scalar_select %p89, %s90, %s91
      %p95 = pneg %p89
      %p96 = scmp.eq.s32.totalorder %s12, 1
      %p97 = por %p95, %p96
      %p98 = scmp.ne.s32.totalorder %s90, %s93
      %p99 = scmp.eq.s32.totalorder %s12, 0
      %p100 = por %p98, %p99
      %p101 = scmp.ne.s32.totalorder %s90, %s93
      %p102 = scmp.eq.s32.totalorder %s17, 1
      %p103 = por %p101, %p102
      %p104 = scmp.ne.s32.totalorder %s93, %s94
      %p105 = scmp.eq.s32.totalorder %s17, 0
      %p106 = por %p104, %p105
      %p107 = scmp.ne.s32.totalorder %s93, %s94
      %p108 = scmp.eq.s32.totalorder %s18, 1
      %p109 = por %p107, %p108
      %p111 = scmp.ne.s32.totalorder %s94, %s110
      %p112 = scmp.eq.s32.totalorder %s18, 0
      %p113 = por %p111, %p112
      %p114 = scmp.le.s32.totalorder 1, %s12
      %p115 = scmp.lt.s32.totalorder %s12, 3
      %p116 = pnand %p114, %p115
      %p117 = pneg %p116
      // Predicated region
      $region9: #{tpu_custom_call.1} parent=5 // pred_check
        _
      $region10: #{tpu_custom_call.1} parent=5 // pred_check_branch
        %119 = sbr.rel (%p116) target = $region12
      $region11: #{tpu_custom_call.1} parent=5 // pred_region
        %s120 = ssub.s32 %s12, 1
        // Predicated region
        $region13: #{tpu_custom_call.1} parent=11 // pred_check
          %p121 = pneg %p59
        $region14: #{tpu_custom_call.1} parent=11 // pred_check_branch
          %123 = sbr.rel (%p121) target = $region16
        $region15: #{tpu_custom_call.1} parent=11 // pred_region
          _
        $region16: #{tpu_custom_call.1} parent=11 // pred_fallthru
          _
        // Predicated region
        $region17: #{tpu_custom_call.1} parent=11 // pred_check
          %p124 = pneg %p80
        $region18: #{tpu_custom_call.1} parent=11 // pred_check_branch
          %126 = sbr.rel (%p124) target = $region20
        $region19: #{tpu_custom_call.1} parent=11 // pred_region
          _
        $region20: #{tpu_custom_call.1} parent=11 // pred_fallthru
          _
      $region12: #{tpu_custom_call.1} parent=5 // pred_fallthru
        _
      %p127 = scmp.lt.s32.totalorder %s12, 2
      // Predicated region
      $region21: #{tpu_custom_call.1} parent=5 // pred_check
        %p128 = pneg %p127
      $region22: #{tpu_custom_call.1} parent=5 // pred_check_branch
        %130 = sbr.rel (%p128) target = $region24
      $region23: #{tpu_custom_call.1} parent=5 // pred_region
        // Predicated region
        $region25: #{tpu_custom_call.1} parent=23 // pred_check
          %p131 = pneg %p32
        $region26: #{tpu_custom_call.1} parent=23 // pred_check_branch
          %133 = sbr.rel (%p131) target = $region28
        $region27: #{tpu_custom_call.1} parent=23 // pred_region
          %p134 = scmp.lt.s32.totalorder %s12, 1
          %s135 = scalar_select %p134, %s12, 1
          %s136 = smul.addr %s135, 16
          %s137 = smul.addr %s136, 8
          %s138 = scalar_lea.vmem %s0, %s137
        $region28: #{tpu_custom_call.1} parent=23 // pred_fallthru
          _
      $region24: #{tpu_custom_call.1} parent=5 // pred_fallthru
        _
      %p139 = scmp.le.s32.totalorder 1, %s12
      %p140 = scmp.lt.s32.totalorder %s12, 3
      %p141 = pnand %p139, %p140
      %p142 = pneg %p141
      // Predicated region
      $region29: #{tpu_custom_call.1} parent=5 // pred_check
        _
      $region30: #{tpu_custom_call.1} parent=5 // pred_check_branch
        %144 = sbr.rel (%p141) target = $region32
      $region31: #{tpu_custom_call.1} parent=5 // pred_region
        %s145 = ssub.s32 %s12, 1
        %p146 = scmp.lt.s32.totalorder %s17, 1
        %s147 = scalar_select %p146, %s17, 1
        %s148 = smul.addr %s147, 16
        %s149 = smul.addr %s148, 8
        %s150 = scalar_lea.vmem %s0, %s149
        %p151 = pneg %p38
        %p152 = pneg %p35
        %p153 = pneg %p59
        %p154 = pneg %p56
        %p155 = pneg %p80
        %p156 = pneg %p77
        %p157 = pneg %p106
        %p158 = pneg %p103
        %s159 = sand.u32 %s93, 1
        %s160 = scalar_lea.sflag [#allocation3], %s159
        %s161 = sand.u32 %s93, 1
        %s162 = smul.addr %s161, 32
        %s163 = scalar_lea.vmem [#allocation2], %s162
        %p164 = scmp.lt.s32.totalorder %s17, 1
        %s165 = scalar_select %p164, %s17, 1
        %s166 = smul.addr %s165, 16
        %s167 = smul.addr %s166, 8
        %s168 = scalar_lea.vmem %s0, %s167
        %v170 = vld [vmem:[%s168] sm:$0xff]
        %v171 = vld [vmem:[%s168 + $0x8] sm:$0xff]
        %v172 = vld [vmem:[%s168 + $0x10] sm:$0xff]
        %v173 = vld [vmem:[%s168 + $0x18] sm:$0xff]
        %v174 = vld [vmem:[%s168 + $0x20] sm:$0xff]
        %v175 = vld [vmem:[%s168 + $0x28] sm:$0xff]
        %v176 = vld [vmem:[%s168 + $0x30] sm:$0xff]
        %v177 = vld [vmem:[%s168 + $0x38] sm:$0xff]
        %v178 = vld [vmem:[%s168 + $0x40] sm:$0xff]
        %v179 = vld [vmem:[%s168 + $0x48] sm:$0xff]
        %v180 = vld [vmem:[%s168 + $0x50] sm:$0xff]
        %v181 = vld [vmem:[%s168 + $0x58] sm:$0xff]
        %v182 = vld [vmem:[%s168 + $0x60] sm:$0xff]
        %v183 = vld [vmem:[%s168 + $0x68] sm:$0xff]
        %v184 = vld [vmem:[%s168 + $0x70] sm:$0xff]
        %v185 = vld [vmem:[%s168 + $0x78] sm:$0xff]
        %v186 = vpack.c.bf16 %v171, %v170
        %v187 = vpack.c.bf16 %v173, %v172
        %v188 = vpack.c.bf16 %v175, %v174
        %v189 = vpack.c.bf16 %v177, %v176
        %v190 = vpack.c.bf16 %v179, %v178
        %v191 = vpack.c.bf16 %v181, %v180
        %v192 = vpack.c.bf16 %v183, %v182
        %v193 = vpack.c.bf16 %v185, %v184
        %v194 = vld [vmem:[%s1] sm:$0xf]
        %v195 = vld [vmem:[%s1 + $0x4] sm:$0xf]
        %v196 = vld [vmem:[%s1 + $0x8] sm:$0xf]
        %v197 = vld [vmem:[%s1 + $0xc] sm:$0xf]
        %v198 = vld [vmem:[%s1 + $0x10] sm:$0xf]
        %v199 = vld [vmem:[%s1 + $0x14] sm:$0xf]
        %v200 = vld [vmem:[%s1 + $0x18] sm:$0xf]
        %v201 = vld [vmem:[%s1 + $0x1c] sm:$0xf]
        %v202 = vld [vmem:[%s1 + $0x20] sm:$0xf]
        %v203 = vld [vmem:[%s1 + $0x24] sm:$0xf]
        %v204 = vld [vmem:[%s1 + $0x28] sm:$0xf]
        %v205 = vld [vmem:[%s1 + $0x2c] sm:$0xf]
        %v206 = vld [vmem:[%s1 + $0x30] sm:$0xf]
        %v207 = vld [vmem:[%s1 + $0x34] sm:$0xf]
        %v208 = vld [vmem:[%s1 + $0x38] sm:$0xf]
        %v209 = vld [vmem:[%s1 + $0x3c] sm:$0xf]
        %v210 = vld [vmem:[%s2] sm:$0xff]
        %v211 = vld [vmem:[%s2 + $0x8] sm:$0xff]
        %v212 = vld [vmem:[%s2 + $0x10] sm:$0xff]
        %v213 = vld [vmem:[%s2 + $0x18] sm:$0xff]
        %v214 = vld [vmem:[%s2 + $0x20] sm:$0xff]
        %v215 = vld [vmem:[%s2 + $0x28] sm:$0xff]
        %v216 = vld [vmem:[%s2 + $0x30] sm:$0xff]
        %v217 = vld [vmem:[%s2 + $0x38] sm:$0xff]
        %v218 = vld [vmem:[%s2 + $0x40] sm:$0xff]
        %v219 = vld [vmem:[%s2 + $0x48] sm:$0xff]
        %v220 = vld [vmem:[%s2 + $0x50] sm:$0xff]
        %v221 = vld [vmem:[%s2 + $0x58] sm:$0xff]
        %v222 = vld [vmem:[%s2 + $0x60] sm:$0xff]
        %v223 = vld [vmem:[%s2 + $0x68] sm:$0xff]
        %v224 = vld [vmem:[%s2 + $0x70] sm:$0xff]
        %v225 = vld [vmem:[%s2 + $0x78] sm:$0xff]
        %227 = vset.pattern.permute.xlu0 0
        %228 = vperm.xlu0 %227, %v210
        %v229 = vpop.permute.xlu0 %228
        %232 = vset.pattern.permute.xlu0 0
        %233 = vperm.xlu0 %232, %v211
        %v234 = vpop.permute.xlu0 %233
        %237 = vset.pattern.permute.xlu0 0
        %238 = vperm.xlu0 %237, %v212
        %v239 = vpop.permute.xlu0 %238
        %242 = vset.pattern.permute.xlu0 0
        %243 = vperm.xlu0 %242, %v213
        %v244 = vpop.permute.xlu0 %243
        %247 = vset.pattern.permute.xlu0 0
        %248 = vperm.xlu0 %247, %v214
        %v249 = vpop.permute.xlu0 %248
        %252 = vset.pattern.permute.xlu0 0
        %253 = vperm.xlu0 %252, %v215
        %v254 = vpop.permute.xlu0 %253
        %257 = vset.pattern.permute.xlu0 0
        %258 = vperm.xlu0 %257, %v216
        %v259 = vpop.permute.xlu0 %258
        %262 = vset.pattern.permute.xlu0 0
        %263 = vperm.xlu0 %262, %v217
        %v264 = vpop.permute.xlu0 %263
        %267 = vset.pattern.permute.xlu0 0
        %268 = vperm.xlu0 %267, %v218
        %v269 = vpop.permute.xlu0 %268
        %272 = vset.pattern.permute.xlu0 0
        %273 = vperm.xlu0 %272, %v219
        %v274 = vpop.permute.xlu0 %273
        %277 = vset.pattern.permute.xlu0 0
        %278 = vperm.xlu0 %277, %v220
        %v279 = vpop.permute.xlu0 %278
        %282 = vset.pattern.permute.xlu0 0
        %283 = vperm.xlu0 %282, %v221
        %v284 = vpop.permute.xlu0 %283
        %287 = vset.pattern.permute.xlu0 0
        %288 = vperm.xlu0 %287, %v222
        %v289 = vpop.permute.xlu0 %288
        %292 = vset.pattern.permute.xlu0 0
        %293 = vperm.xlu0 %292, %v223
        %v294 = vpop.permute.xlu0 %293
        %297 = vset.pattern.permute.xlu0 0
        %298 = vperm.xlu0 %297, %v224
        %v299 = vpop.permute.xlu0 %298
        %302 = vset.pattern.permute.xlu0 0
        %303 = vperm.xlu0 %302, %v225
        %v304 = vpop.permute.xlu0 %303
        %v322 = vunpack.c.l.b16 %v194
        %v323 = vunpack.c.l.b16 %v195
        %v324 = vunpack.c.l.b16 %v196
        %v325 = vunpack.c.l.b16 %v197
        %v326 = vunpack.c.l.b16 %v198
        %v327 = vunpack.c.l.b16 %v199
        %v328 = vunpack.c.l.b16 %v200
        %v329 = vunpack.c.l.b16 %v201
        %v330 = vunpack.c.l.b16 %v202
        %v331 = vunpack.c.l.b16 %v203
        %v332 = vunpack.c.l.b16 %v204
        %v333 = vunpack.c.l.b16 %v205
        %v334 = vunpack.c.l.b16 %v206
        %v335 = vunpack.c.l.b16 %v207
        %v336 = vunpack.c.l.b16 %v208
        %v337 = vunpack.c.l.b16 %v209
        %v338 = vpack.c.b16 %v323, %v322
        %v339 = vpack.c.b16 %v325, %v324
        %v340 = vpack.c.b16 %v327, %v326
        %v341 = vpack.c.b16 %v329, %v328
        %v342 = vpack.c.b16 %v331, %v330
        %v343 = vpack.c.b16 %v333, %v332
        %v344 = vpack.c.b16 %v335, %v334
        %v345 = vpack.c.b16 %v337, %v336
        %354 = vmatprep.subr.bf16.mxu0 0
        %355 = vmatpush1.bf16.msra.mxu0 %v186
        %356 = vmatprep.subr.bf16.mxu0 0
        %357 = vmatpush1.bf16.msra.mxu0 %v187
        %358 = vmatprep.subr.bf16.mxu0 0
        %359 = vmatpush1.bf16.msra.mxu0 %v188
        %360 = vmatprep.subr.bf16.mxu0 0
        %361 = vmatpush1.bf16.msra.mxu0 %v189
        %362 = vmatprep.subr.bf16.mxu0 0
        %363 = vmatpush1.bf16.msra.mxu0 %v190
        %364 = vmatprep.subr.bf16.mxu0 0
        %365 = vmatpush1.bf16.msra.mxu0 %v191
        %366 = vmatprep.subr.bf16.mxu0 0
        %367 = vmatpush1.bf16.msra.mxu0 %v192
        %368 = vmatprep.subr.bf16.mxu0 0
        %369 = vmatpush1.bf16.msra.mxu0 %v193
        %370 = vmatprep.subr.bf16.mxu0 0
        %371 = vmatpush1.bf16.msra.mxu0 0
        %372 = vmatprep.subr.bf16.mxu0 0
        %373 = vmatpush1.bf16.msra.mxu0 0
        %374 = vmatprep.subr.bf16.mxu0 0
        %375 = vmatpush1.bf16.msra.mxu0 0
        %376 = vmatprep.subr.bf16.mxu0 0
        %377 = vmatpush1.bf16.msra.mxu0 0
        %378 = vmatprep.subr.bf16.mxu0 0
        %379 = vmatpush1.bf16.msra.mxu0 0
        %380 = vmatprep.subr.bf16.mxu0 0
        %381 = vmatpush1.bf16.msra.mxu0 0
        %382 = vmatprep.subr.bf16.mxu0 0
        %383 = vmatpush1.bf16.msra.mxu0 0
        %384 = vmatprep.subr.bf16.mxu0 0
        %385 = vmatpush1.bf16.msra.mxu0 0
        %386 = vmatprep.mubr.bf16.mxu0 0
        %387 = vmatmul.mubr.bf16.gmra.mrb[0].mxu0 %v338
        %v388 = vpop.f32.mrb[0].mxu0
        %v389 = vadd.f32 %v229, %v388
        %v390 = vpop.f32.mrb[0].mxu0
        %v391 = vpop.f32.mrb[0].mxu0
        %v392 = vadd.f32 %v234, %v391
        %v393 = vpop.f32.mrb[0].mxu0
        %394 = vmatprep.mubr.bf16.mxu0 0
        %395 = vmatmul.mubr.bf16.gmra.mrb[0].mxu0 %v339
        %v396 = vpop.f32.mrb[0].mxu0
        %v397 = vadd.f32 %v239, %v396
        %v398 = vpop.f32.mrb[0].mxu0
        %v399 = vpop.f32.mrb[0].mxu0
        %v400 = vadd.f32 %v244, %v399
        %v401 = vpop.f32.mrb[0].mxu0
        %402 = vmatprep.mubr.bf16.mxu0 0
        %403 = vmatmul.mubr.bf16.gmra.mrb[0].mxu0 %v340
        %v404 = vpop.f32.mrb[0].mxu0
        %v405 = vadd.f32 %v249, %v404
        %v406 = vpop.f32.mrb[0].mxu0
        %v407 = vpop.f32.mrb[0].mxu0
        %v408 = vadd.f32 %v254, %v407
        %v409 = vpop.f32.mrb[0].mxu0
        %410 = vmatprep.mubr.bf16.mxu0 0
        %411 = vmatmul.mubr.bf16.gmra.mrb[0].mxu0 %v341
        %v412 = vpop.f32.mrb[0].mxu0
        %v413 = vadd.f32 %v259, %v412
        %v414 = vpop.f32.mrb[0].mxu0
        %v415 = vpop.f32.mrb[0].mxu0
        %v416 = vadd.f32 %v264, %v415
        %v417 = vpop.f32.mrb[0].mxu0
        %418 = vmatprep.mubr.bf16.mxu0 0
        %419 = vmatmul.mubr.bf16.gmra.mrb[0].mxu0 %v342
        %v420 = vpop.f32.mrb[0].mxu0
        %v421 = vadd.f32 %v269, %v420
        %v422 = vpop.f32.mrb[0].mxu0
        %v423 = vpop.f32.mrb[0].mxu0
        %v424 = vadd.f32 %v274, %v423
        %v425 = vpop.f32.mrb[0].mxu0
        %426 = vmatprep.mubr.bf16.mxu0 0
        %427 = vmatmul.mubr.bf16.gmra.mrb[0].mxu0 %v343
        %v428 = vpop.f32.mrb[0].mxu0
        %v429 = vadd.f32 %v279, %v428
        %v430 = vpop.f32.mrb[0].mxu0
        %v431 = vpop.f32.mrb[0].mxu0
        %v432 = vadd.f32 %v284, %v431
        %v433 = vpop.f32.mrb[0].mxu0
        %434 = vmatprep.mubr.bf16.mxu0 0
        %435 = vmatmul.mubr.bf16.gmra.mrb[0].mxu0 %v344
        %v436 = vpop.f32.mrb[0].mxu0
        %v437 = vadd.f32 %v289, %v436
        %v438 = vpop.f32.mrb[0].mxu0
        %v439 = vpop.f32.mrb[0].mxu0
        %v440 = vadd.f32 %v294, %v439
        %v441 = vpop.f32.mrb[0].mxu0
        %442 = vmatprep.mubr.bf16.mxu0 0
        %443 = vmatmul.mubr.bf16.gmra.mrb[0].mxu0 %v345
        %v444 = vpop.f32.mrb[0].mxu0
        %v445 = vadd.f32 %v299, %v444
        %v446 = vpop.f32.mrb[0].mxu0
        %v447 = vpop.f32.mrb[0].mxu0
        %v448 = vadd.f32 %v304, %v447
        %v449 = vpop.f32.mrb[0].mxu0
        %450 = vdwg.mxu0
        %451 = vxpose.xlu0.b32.start [1/16] %v389, 128
        %452 = vxpose.xlu0.b32.cont [2/16] %v392, 128
        %453 = vxpose.xlu0.b32.cont [3/16] %v397, 128
        %454 = vxpose.xlu0.b32.cont [4/16] %v400, 128
        %455 = vxpose.xlu0.b32.cont [5/16] %v405, 128
        %456 = vxpose.xlu0.b32.cont [6/16] %v408, 128
        %457 = vxpose.xlu0.b32.cont [7/16] %v413, 128
        %458 = vxpose.xlu0.b32.cont [8/16] %v416, 128
        %459 = vxpose.xlu0.b32.cont [9/16] %v421, 128
        %460 = vxpose.xlu0.b32.cont [10/16] %v424, 128
        %461 = vxpose.xlu0.b32.cont [11/16] %v429, 128
        %462 = vxpose.xlu0.b32.cont [12/16] %v432, 128
        %463 = vxpose.xlu0.b32.cont [13/16] %v437, 128
        %464 = vxpose.xlu0.b32.cont [14/16] %v440, 128
        %465 = vxpose.xlu0.b32.cont [15/16] %v445, 128
        %466 = vxpose.xlu0.b32.end [16/16] %v448, 128
        %v467 = vpop.trf.xlu0
        %v468 = vpop.trf.xlu0
        %v469 = vpop.trf.xlu0
        %v470 = vpop.trf.xlu0
        %v471 = vpop.trf.xlu0
        %v472 = vpop.trf.xlu0
        %v473 = vpop.trf.xlu0
        %v474 = vpop.trf.xlu0
        %v475 = vpop.trf.xlu0
        %v476 = vpop.trf.xlu0
        %v477 = vpop.trf.xlu0
        %v478 = vpop.trf.xlu0
        %v479 = vpop.trf.xlu0
        %v480 = vpop.trf.xlu0
        %v481 = vpop.trf.xlu0
        %v482 = vpop.trf.xlu0
        %v483 = vpack.c.bf16 %v468, %v467
        %v484 = vpack.c.bf16 %v470, %v469
        %v485 = vpack.c.bf16 %v472, %v471
        %v486 = vpack.c.bf16 %v474, %v473
        %v491 = vunpack.c.l.b16 %v483
        %v492 = vunpack.c.h.b16 %v483
        %v493 = vunpack.c.l.b16 %v484
        %v494 = vunpack.c.h.b16 %v484
        %v495 = vunpack.c.l.b16 %v485
        %v496 = vunpack.c.h.b16 %v485
        %v497 = vunpack.c.l.b16 %v486
        %v498 = vunpack.c.h.b16 %v486
        %v499 = vpack.c.b16 %v491, %v491
        %v500 = vpack.c.b16 %v492, %v492
        %v501 = vpack.c.b16 %v493, %v493
        %v502 = vpack.c.b16 %v494, %v494
        %v503 = vpack.c.b16 %v495, %v495
        %v504 = vpack.c.b16 %v496, %v496
        %v505 = vpack.c.b16 %v497, %v497
        %v506 = vpack.c.b16 %v498, %v498
        %515 = vst [vmem:[%s163] sm:$0xf] %v499
        %516 = vst [vmem:[%s163 + $0x4] sm:$0xf] %v500
        %517 = vst [vmem:[%s163 + $0x8] sm:$0xf] %v501
        %518 = vst [vmem:[%s163 + $0xc] sm:$0xf] %v502
        %519 = vst [vmem:[%s163 + $0x10] sm:$0xf] %v503
        %520 = vst [vmem:[%s163 + $0x14] sm:$0xf] %v504
        %521 = vst [vmem:[%s163 + $0x18] sm:$0xf] %v505
        %522 = vst [vmem:[%s163 + $0x1c] sm:$0xf] %v506
        %s523 = sand.u32 %s93, 1
        %s524 = scalar_lea.sflag [#allocation3], %s523
        %s525 = sand.u32 %s93, 1
        %s526 = smul.addr %s525, 32
        %s527 = scalar_lea.vmem [#allocation2], %s526
        // Predicated region
        $region33: #{tpu_custom_call.1} parent=31 // pred_check
          %p528 = pneg %p103
        $region34: #{tpu_custom_call.1} parent=31 // pred_check_branch
          %530 = sbr.rel (%p528) target = $region36
        $region35: #{tpu_custom_call.1} parent=31 // pred_region
          %s532 = ssub.s32 512, 512
          %533 = vsyncadd %s524, %s532
          %s534 = smul.addr %s17, 8
          %s535 = smul.addr %s534, 64
          %s536 = scalar_lea.hbm %s3, %s535
          %s537 = sshll.u32 %s527, 4
          %s538 = int_to_ptr.vmem [resolvable:$true] %s537
          %543 = dma.vmem_to_hbm [thread:$0]  %s538, 512, %s536, %s524, 64, 64, 4
        $region36: #{tpu_custom_call.1} parent=31 // pred_fallthru
          _
      $region32: #{tpu_custom_call.1} parent=5 // pred_fallthru
        _
      %p544 = scmp.le.s32.totalorder 2, %s12
      // Predicated region
      $region37: #{tpu_custom_call.1} parent=5 // pred_check
        %p545 = pneg %p544
      $region38: #{tpu_custom_call.1} parent=5 // pred_check_branch
        %547 = sbr.rel (%p545) target = $region40
      $region39: #{tpu_custom_call.1} parent=5 // pred_region
        %s548 = ssub.s32 %s12, 2
        // Predicated region
        $region41: #{tpu_custom_call.1} parent=39 // pred_check
          %p549 = pneg %p109
        $region42: #{tpu_custom_call.1} parent=39 // pred_check_branch
          %551 = sbr.rel (%p549) target = $region44
        $region43: #{tpu_custom_call.1} parent=39 // pred_region
          %s552 = sand.u32 %s94, 1
          %s553 = scalar_lea.sflag [#allocation3], %s552
          %s554 = sand.u32 %s94, 1
          %s555 = smul.addr %s554, 32
          %s556 = scalar_lea.vmem [#allocation2], %s555
          %557 = dma.done %s553, 512
        $region44: #{tpu_custom_call.1} parent=39 // pred_fallthru
          _
      $region40: #{tpu_custom_call.1} parent=5 // pred_fallthru
        _
    $region6: #{tpu_custom_call.1} parent=1 // loop_footer
      %s16 = sadd.s32 1, %s12
    $region7: #{tpu_custom_call.1} parent=1 // loop_footer_branch
      %11 = sbr.rel target = $region3
    $region8: #{tpu_custom_call.1} parent=1 // loop_exit
      _
    %558 = vsyncpa [#allocation3], 1
    %s559 = scalar_lea.sflag [#allocation3], 1
    %560 = vsyncpa %s559, 1

</llo_original>
